<compile_context>
chip_gen: v6e
topology: v6e:2x2x1
jax: 0.10.0
libtpu: 0.0.40
codegen_flags: <defaults>
</compile_context>

<pallas_src>
import jax
import jax.numpy as jnp
from jax.experimental import pallas as pl
from jax.experimental.pallas import tpu as pltpu

_LANES = 128
# ~8 MiB per block (per pipeline buffer).
_TARGET_BLOCK_BYTES = 8 * 1024 * 1024
# Explicit scoped-VMEM limit: 32 MiB of pipeline buffers + internal scratch,
# valid on every generation (<= 64 MiB physical on v7x, << 128 MiB on v5e/v6e).
_VMEM_LIMIT_BYTES = 48 * 1024 * 1024


def _relu_kernel(x_ref, o_ref):
    # Elementwise ReLU on the current VMEM tile (VPU path).  The weak-typed 0
    # literal keeps bf16 / integer dtypes intact.
    o_ref[...] = jnp.maximum(x_ref[...], 0)


def _sublane_min(dtype) -> int:
    # Minimum second-minor tile extent per dtype (sub-32-bit packs sublanes).
    itemsize = jnp.dtype(dtype).itemsize
    return {4: 8, 2: 16, 1: 32}.get(itemsize, 8)


def _round_up(n: int, m: int) -> int:
    return -(-n // m) * m


def _num_tensorcores() -> int:
    """Best-effort TensorCores per JAX device: 2 on v7x-class chips, else 1."""
    try:
        kind = jax.devices()[0].device_kind.lower()
    except Exception:
        return 1
    # v5e / v6e expose a single TensorCore per chip; v7x exposes two.
    return 2 if "7" in kind else 1


def _relu_2d(x2d: jax.Array, *, donate: bool = False) -> jax.Array:
    """ReLU over a (rows, 128) lane-dense slab."""
    rows, lanes = x2d.shape
    dtype = x2d.dtype
    sub = _sublane_min(dtype)
    itemsize = jnp.dtype(dtype).itemsize
    num_tc = _num_tensorcores()

    # ~8 MiB blocks, rounded down to the dtype's sublane minimum.
    tile_rows = max(sub, (_TARGET_BLOCK_BYTES // (lanes * itemsize)) // sub * sub)

    if rows <= tile_rows:
        if num_tc >= 2 and rows >= 2 * sub:
            # 2-TC chips (v7x): split so both TensorCores share the
            # bandwidth-bound work (grid axis is marked "parallel").
            tile_rows = _round_up(pl.cdiv(rows, 2), sub)
        else:
            # Single-TC chips (v5e/v6e) or tiny inputs: one block covering the
            # full array (legal: block extent equals the full array dim).
            tile_rows = rows
    elif num_tc >= 2:
        # Mid-size inputs on 2-TC chips: prefer an even block count so neither
        # core sits idle while the other finishes the odd block.
        g = pl.cdiv(rows, tile_rows)
        if g <= 8 and g % 2 == 1:
            tile_rows = _round_up(pl.cdiv(rows, g + 1), sub)

    grid = (pl.cdiv(rows, tile_rows),)

    return pl.pallas_call(
        _relu_kernel,
        out_shape=jax.ShapeDtypeStruct((rows, lanes), dtype),
        grid_spec=pltpu.PrefetchScalarGridSpec(
            num_scalar_prefetch=0,
            grid=grid,
            # Default double-buffering already hides DMA for 1 in + 1 out with
            # contiguous full-lane blocks; spare VMEM buys bigger blocks.
            in_specs=[pl.BlockSpec((tile_rows, lanes), lambda i: (i, 0))],
            out_specs=pl.BlockSpec((tile_rows, lanes), lambda i: (i, 0)),
        ),
        compiler_params=pltpu.CompilerParams(
            dimension_semantics=("parallel",),
            vmem_limit_bytes=_VMEM_LIMIT_BYTES,
        ),
        cost_estimate=pl.CostEstimate(
            flops=rows * lanes,
            transcendentals=0,
            bytes_accessed=2 * rows * lanes * itemsize,
        ),
        # Optional in-place path: alias input 0 -> output 0 when the caller
        # can donate x (halves HBM footprint; bytes moved are unchanged).
        input_output_aliases=({0: 0} if donate else {}),
    )(x2d)


def relu_pallas(x: jax.Array, *, donate: bool = False) -> jax.Array:
    """Apply ReLU to an arbitrarily-shaped array via a Pallas TPU kernel."""
    orig_shape = x.shape
    total = x.size
    if total == 0:
        return x

    if total % _LANES != 0:
        # Ragged sizes (rare): a pad -> kernel -> slice round trip would pay
        # ~3x the HBM traffic of a single fused pass, so let XLA handle it.
        return jnp.maximum(x, 0)

    # Aligned fast path: only free contiguous reshapes around the kernel.
    rows = total // _LANES
    out2d = _relu_2d(x.reshape(rows, _LANES), donate=donate)
    return out2d.reshape(orig_shape)


if __name__ == "__main__":
    key = jax.random.PRNGKey(0)
    # Small NCHW input consistent with a conv-net style module: [2, 4, 16, 16]
    x = jax.random.normal(key, (2, 4, 16, 16), dtype=jnp.float32)

    y = relu_pallas(x)
    y = jax.block_until_ready(y)

    # Correctness check against the plain-JAX reference (out-of-place path).
    y_ref = jnp.maximum(x, 0.0)
    assert y.shape == x.shape and y.dtype == x.dtype
    assert bool(jnp.allclose(y, y_ref)), "Pallas ReLU mismatch vs reference (f32)"

    # Also exercise the dtype-aware (16-sublane) path with bf16.
    xb = x.astype(jnp.bfloat16)
    yb = jax.block_until_ready(relu_pallas(xb))
    assert yb.dtype == jnp.bfloat16
    assert bool(jnp.all(yb == jnp.maximum(xb, 0))), "Pallas ReLU mismatch vs reference (bf16)"

    # Ragged-size path (handled by a single fused XLA pass, not pad+slice).
    xr = jax.random.normal(key, (3, 5, 7), dtype=jnp.float32)
    yr = jax.block_until_ready(relu_pallas(xr))
    assert bool(jnp.allclose(yr, jnp.maximum(xr, 0.0))), "ReLU mismatch (ragged)"

    print("KERNEL_OK")
</pallas_src>

<mosaic_0001>
module attributes {stable_mosaic.version = 11 : i64} {
  func.func @_relu_kernel(%arg0: i32, %arg1: memref<16x128xf32, #tpu.memory_space<vmem>>, %arg2: memref<16x128xf32, #tpu.memory_space<vmem>>) attributes {dimension_semantics = [#tpu.dimension_semantics<parallel>], iteration_bounds = array<i64: 1>, scalar_prefetch = 0 : i64, scratch_operands = 0 : i64, tpu.core_type = #tpu.core_type<tc>, window_params = [{transform_indices = @transform_0, window_bounds = array<i64: 16, 128>}, {transform_indices = @transform_1, window_bounds = array<i64: 16, 128>}]} {
    %c0 = arith.constant 0 : index
    %c0_0 = arith.constant 0 : index
    %0 = vector.load %arg1[%c0, %c0_0] : memref<16x128xf32, #tpu.memory_space<vmem>>, vector<16x128xf32>
    %cst = arith.constant 0.000000e+00 : f32
    %1 = vector.broadcast %cst : f32 to vector<16x128xf32>
    %2 = arith.maximumf %0, %1 : vector<16x128xf32>
    %c0_1 = arith.constant 0 : index
    %c0_2 = arith.constant 0 : index
    %3 = vector.load %arg2[%c0_1, %c0_2] : memref<16x128xf32, #tpu.memory_space<vmem>>, vector<16x128xf32>
    tpu.vector_store %arg2[%c0_1, %c0_2], %2 {strides = array<i32>} : memref<16x128xf32, #tpu.memory_space<vmem>>, vector<16x128xf32>,
    return
  }
  func.func @transform_0(%arg0: i32) -> (i32, i32) {
    %c0_i32 = arith.constant 0 : i32
    %c0_i32_0 = arith.constant 0 : i32
    return %arg0, %c0_i32 : i32, i32
  }
  func.func @transform_1(%arg0: i32) -> (i32, i32) {
    %c0_i32 = arith.constant 0 : i32
    %c0_i32_0 = arith.constant 0 : i32
    return %arg0, %c0_i32 : i32, i32
  }
}

</mosaic_0001>

<llo_original>
// kernel: tpu_custom_call.1
$region0: #{tpu_custom_call.1}
  #allocation0 [shape = 'u32[]', space=smem, size = 0x4, offset = 0x4, fixed_abs, tag = 'smem constant byte address 0x4 - core index']
  #allocation1 [shape = 'u32[144,128]{1,0:T(1,128)}', space=vmem, size = 0x12000, scoped, tag = 'internal scratch']
  %s0 = inlined_call_operand.hbm [shape: f32[16,128], index: 0, kind: input, shape index: {}]
  %s1 = inlined_call_operand.hbm [shape: f32[16,128], index: 1, kind: output, shape index: {}]
  %s2 = sld [smem:[#allocation0]]
  $region18: #{tpu_custom_call.1} parent=0
    _
  %s4 = ssub.s32 1, %s2
  %s5 = scalar_select 0, %s4, %s2
  $region1: #{tpu_custom_call.1} parent=0
    #allocation2 [shape = 'u8[8192]{0}', space=vmem, size = 0x2000, scoped, tag = 'input window, operand 0, single buffered']
    #allocation3 [shape = 's32[1]{0}', space=sflag, size = 0x4, scoped, tag = 'scoped memory for tpu_custom_call.1']
    #allocation4 [shape = 's32[1]{0}', space=sflag, size = 0x4, scoped, tag = 'scoped memory for tpu_custom_call.1']
    #allocation5 [shape = 'u8[8192]{0}', space=vmem, size = 0x2000, scoped, tag = 'output window, operand 0, single buffered']
    %6 = vsyncpa [#allocation3], 0
    %7 = vsyncpa [#allocation4], 0
    // Predicated region
    $region2: #{tpu_custom_call.1} parent=1 // pred_check
      _
    $region3: #{tpu_custom_call.1} parent=1 // pred_check_branch
      %9 = sbr.rel (0) target = $region5
    $region4: #{tpu_custom_call.1} parent=1 // pred_region
      %s11 = ssub.s32 256, 256
      %12 = vsyncadd [#allocation3], %s11
      %s13 = sshll.u32 [#allocation2], 4
      %s14 = int_to_ptr.vmem [resolvable:$true] %s13
      %19 = dma.hbm_to_vmem [thread:$0]  %s0, 256, %s14, [#allocation3], 128, 128, 8
    $region5: #{tpu_custom_call.1} parent=1 // pred_fallthru
      _
    // Predicated region
    $region6: #{tpu_custom_call.1} parent=1 // pred_check
      _
    $region7: #{tpu_custom_call.1} parent=1 // pred_check_branch
      %21 = sbr.rel (0) target = $region9
    $region8: #{tpu_custom_call.1} parent=1 // pred_region
      %22 = dma.done [#allocation3], 256
    $region9: #{tpu_custom_call.1} parent=1 // pred_fallthru
      _
    %v23 = vld [vmem:[#allocation2] sm:$0xff]
    %v24 = vld [vmem:[#allocation2 + $0x8] sm:$0xff]
    %v25 = vmax.f32 %v23, 0.0
    %v26 = vmax.f32 %v24, 0.0
    %27 = vst [vmem:[#allocation5] sm:$0xff] %v25
    %28 = vst [vmem:[#allocation5 + $0x8] sm:$0xff] %v26
    // Predicated region
    $region10: #{tpu_custom_call.1} parent=1 // pred_check
      _
    $region11: #{tpu_custom_call.1} parent=1 // pred_check_branch
      %30 = sbr.rel (0) target = $region13
    $region12: #{tpu_custom_call.1} parent=1 // pred_region
      %s32 = ssub.s32 256, 256
      %33 = vsyncadd [#allocation4], %s32
      %s34 = sshll.u32 [#allocation5], 4
      %s35 = int_to_ptr.vmem [resolvable:$true] %s34
      %40 = dma.vmem_to_hbm [thread:$0]  %s35, 256, %s1, [#allocation4], 128, 128, 8
    $region13: #{tpu_custom_call.1} parent=1 // pred_fallthru
      _
    // Predicated region
    $region14: #{tpu_custom_call.1} parent=1 // pred_check
      _
    $region15: #{tpu_custom_call.1} parent=1 // pred_check_branch
      %42 = sbr.rel (0) target = $region17
    $region16: #{tpu_custom_call.1} parent=1 // pred_region
      %43 = dma.done [#allocation4], 256
    $region17: #{tpu_custom_call.1} parent=1 // pred_fallthru
      _
    %44 = vsyncpa [#allocation3], 1
    %45 = vsyncpa [#allocation4], 1

</llo_original>
